<compile_context>
chip_gen: v7x
topology: tpu7x:2x2x1
jax: 0.10.0
libtpu: 0.0.40
codegen_flags: <defaults>
</compile_context>

<pallas_src>
import jax
import jax.numpy as jnp
from jax.experimental import pallas as pl
from jax.experimental.pallas import tpu as pltpu


def _bias_add_kernel(x_ref, b_ref, o_ref):
    # x_ref: (TR, TL)  activation tile; rows = flattened (batch, channel),
    #                  lanes = flattened spatial (H*W).
    # b_ref: (TR, 1)   per-row (i.e. per-channel) shift, broadcast along lanes.
    o_ref[...] = x_ref[...] + b_ref[...]


def _device_defaults():
    """Per-generation (target_block_bytes, vmem_limit_bytes)."""
    try:
        kind = jax.devices()[0].device_kind.lower()
    except Exception:
        kind = ""
    if "v7" in kind:
        # Fast HBM (~3.2 TB/s) + only 64 MiB physical VMEM: 8 MiB blocks,
        # 2 streams x 2 buffers x 8 MiB = 32 MiB -> raise scoped limit to 48 MiB.
        return 8 << 20, 48 << 20
    if "v6" in kind:
        return 8 << 20, 64 << 20
    if "v5e" in kind or "v5 lite" in kind or "v5litepod" in kind:
        # v5e: 16 MiB scoped default; 2 MiB blocks already keep overhead <10%.
        return 2 << 20, 32 << 20
    if "v5" in kind or "v4" in kind:     # v5p / v4: 128 MiB physical VMEM
        return 8 << 20, 64 << 20
    return 2 << 20, None                 # unknown generation: stay conservative


def _pick_tiles(n_rows, n_lanes, itemsize, target_block_bytes):
    """Pick (row_tile, lane_tile) obeying the (sublane, 128) layout rule while
    filling roughly `target_block_bytes` per block.

    Rows first (the flattened batch*channel axis is typically tiny), then the
    lane tile grows to fill the remaining budget; the full lane extent is used
    whenever it fits, avoiding a masked partial lane block."""
    target_elems = max(1, target_block_bytes // itemsize)
    row_q = max(8, (8 * 4) // itemsize)   # 8 for f32, 16 for bf16, 32 for int8/fp8

    # Row tile.
    if n_rows <= row_q or n_rows * 128 <= target_elems:
        tr = n_rows                                    # full extent (always legal)
    else:
        tr = max(row_q, ((target_elems // 128) // row_q) * row_q)
        tr = min(tr, (n_rows // row_q) * row_q)

    # Lane tile: full extent if it fits the budget, else biggest 128-multiple.
    budget_lanes = max(128, target_elems // max(tr, 1))
    if n_lanes <= budget_lanes:
        tl = n_lanes                                   # full extent, no masked tail
    else:
        tl = max(128, (budget_lanes // 128) * 128)

    # Guarantee >=2 parallel blocks so v7x's two TensorCores both get work
    # (negligible extra cost on single-TC v5e/v6e).
    if pl.cdiv(n_rows, tr) * pl.cdiv(n_lanes, tl) == 1:
        if n_lanes >= 256 and n_lanes % 256 == 0:
            tl = n_lanes // 2                          # two lane-dense halves
        elif n_rows >= 2 * row_q and n_rows % (2 * row_q) == 0:
            tr = n_rows // 2

    return tr, tl


def mean_shift_pallas(x_nchw, shift, *, donate=False):
    """x_nchw: (N, C, H, W); shift: (C,).  Returns (N, C, H, W) = x + shift[c].

    Set donate=True only if the caller can donate x's buffer (aliases the
    output onto the input, removing the extra HBM allocation)."""
    N, C, H, W = x_nchw.shape
    R, L = N * C, H * W

    # NCHW -> (N*C, H*W) is a free view (no data movement, no transposes).
    x2d = x_nchw.reshape(R, L)
    # Per-row bias column: row r corresponds to channel r % C.
    bias_col = jnp.tile(shift.astype(x_nchw.dtype), N).reshape(R, 1)

    itemsize = jnp.dtype(x_nchw.dtype).itemsize
    target_block_bytes, vmem_limit = _device_defaults()
    tr, tl = _pick_tiles(R, L, itemsize, target_block_bytes)
    grid = (pl.cdiv(R, tr), pl.cdiv(L, tl))

    cp_kwargs = dict(dimension_semantics=("parallel", "parallel"))
    if vmem_limit is not None:
        cp_kwargs["vmem_limit_bytes"] = int(vmem_limit)

    call_kwargs = {}
    if donate:
        call_kwargs["input_output_aliases"] = {0: 0}   # x2d -> output

    out2d = pl.pallas_call(
        _bias_add_kernel,
        out_shape=jax.ShapeDtypeStruct((R, L), x_nchw.dtype),
        grid_spec=pltpu.PrefetchScalarGridSpec(
            num_scalar_prefetch=0,
            grid=grid,
            in_specs=[
                pl.BlockSpec((tr, tl), lambda i, j: (i, j)),  # activation tile
                pl.BlockSpec((tr, 1), lambda i, j: (i, 0)),   # per-row shift
            ],
            out_specs=pl.BlockSpec((tr, tl), lambda i, j: (i, j)),
        ),
        compiler_params=pltpu.CompilerParams(**cp_kwargs),
        cost_estimate=pl.CostEstimate(
            flops=R * L,
            transcendentals=0,
            bytes_accessed=2 * R * L * itemsize + R * itemsize,
        ),
        **call_kwargs,
    )(x2d, bias_col)

    return out2d.reshape(N, C, H, W)


def make_mean_shift_bias(rgb_range, rgb_mean, sign, n_channel=6, dtype=jnp.float32):
    """Deterministic bias construction matching meanShift.__init__ (the identity
    1x1 weight is folded away, so only the shift vector is needed)."""
    assert n_channel in (1, 3, 6), f"unsupported channel count: {n_channel}"
    if n_channel == 1:
        vals = [rgb_mean[0] * rgb_range * float(sign)]
    elif n_channel == 3:
        vals = [m * rgb_range * float(sign) for m in rgb_mean[:3]]
    else:  # 6-channel case used by the conversion script (f1 has 6 channels)
        rgb = [m * rgb_range * float(sign) for m in rgb_mean[:3]]
        vals = rgb + rgb
    return jnp.array(vals, dtype=dtype)


if __name__ == "__main__":
    # Small deterministic example consistent with the script: (N, 6, H, W).
    N, C, H, W = 2, 6, 16, 16
    key = jax.random.PRNGKey(0)
    x = jax.random.uniform(key, (N, C, H, W), dtype=jnp.float32)

    rgb_range = 255.0
    rgb_mean = (0.4488, 0.4371, 0.4040)   # DIV2K-style mean
    sign = -1

    shift = make_mean_shift_bias(rgb_range, rgb_mean, sign, n_channel=C)

    y = jax.block_until_ready(mean_shift_pallas(x, shift))

    # Reference: identity 1x1 conv + per-channel bias == per-channel shift add.
    y_ref = x + shift.reshape(1, C, 1, 1)
    assert y.shape == (N, C, H, W)
    assert jnp.allclose(y, y_ref, atol=1e-5, rtol=1e-5)

    print("KERNEL_OK")
</pallas_src>

<mosaic_0001>
module attributes {stable_mosaic.version = 11 : i64} {
  func.func @_bias_add_kernel(%arg0: i32, %arg1: i32, %arg2: memref<12x128xf32, #tpu.memory_space<vmem>>, %arg3: memref<12x1xf32, #tpu.memory_space<vmem>>, %arg4: memref<12x128xf32, #tpu.memory_space<vmem>>) attributes {dimension_semantics = [#tpu.dimension_semantics<parallel>, #tpu.dimension_semantics<parallel>], iteration_bounds = array<i64: 1, 2>, scalar_prefetch = 0 : i64, scratch_operands = 0 : i64, tpu.core_type = #tpu.core_type<tc>, window_params = [{transform_indices = @transform_0, window_bounds = array<i64: 12, 128>}, {transform_indices = @transform_1, window_bounds = array<i64: 12, 1>}, {transform_indices = @transform_2, window_bounds = array<i64: 12, 128>}]} {
    %c0 = arith.constant 0 : index
    %c0_0 = arith.constant 0 : index
    %0 = vector.load %arg2[%c0, %c0_0] : memref<12x128xf32, #tpu.memory_space<vmem>>, vector<12x128xf32>
    %c0_1 = arith.constant 0 : index
    %c0_2 = arith.constant 0 : index
    %1 = vector.load %arg3[%c0_1, %c0_2] : memref<12x1xf32, #tpu.memory_space<vmem>>, vector<12x1xf32>
    %2 = vector.broadcast %1 : vector<12x1xf32> to vector<12x128xf32>
    %3 = arith.addf %0, %2 : vector<12x128xf32>
    %c0_3 = arith.constant 0 : index
    %c0_4 = arith.constant 0 : index
    %4 = vector.load %arg4[%c0_3, %c0_4] : memref<12x128xf32, #tpu.memory_space<vmem>>, vector<12x128xf32>
    tpu.vector_store %arg4[%c0_3, %c0_4], %3 {strides = array<i32>} : memref<12x128xf32, #tpu.memory_space<vmem>>, vector<12x128xf32>,
    return
  }
  func.func @transform_0(%arg0: i32, %arg1: i32) -> (i32, i32) {
    %c0_i32 = arith.constant 0 : i32
    return %arg0, %arg1 : i32, i32
  }
  func.func @transform_1(%arg0: i32, %arg1: i32) -> (i32, i32) {
    %c0_i32 = arith.constant 0 : i32
    %c0_i32_0 = arith.constant 0 : i32
    return %arg0, %c0_i32 : i32, i32
  }
  func.func @transform_2(%arg0: i32, %arg1: i32) -> (i32, i32) {
    %c0_i32 = arith.constant 0 : i32
    return %arg0, %arg1 : i32, i32
  }
}

</mosaic_0001>

<llo_original>
// kernel: tpu_custom_call.1
$region0: #{tpu_custom_call.1}
  #allocation0 [shape = 'u32[]', space=smem, size = 0x4, offset = 0x4, fixed_abs, tag = 'smem constant byte address 0x4 - core index']
  #allocation1 [shape = 'u32[144,128]{1,0:T(1,128)}', space=vmem, size = 0x12000, scoped, tag = 'internal scratch']
  %s0 = inlined_call_operand.hbm [shape: f32[12,256], index: 0, kind: input, shape index: {}]
  %s1 = inlined_call_operand.vmem [shape: f32[12,1], index: 1, kind: input, shape index: {}]
  %s2 = inlined_call_operand.hbm [shape: f32[12,256], index: 2, kind: output, shape index: {}]
  %s3 = sld [smem:[#allocation0]]
  $region45: #{tpu_custom_call.1} parent=0
    _
  %s5 = ssub.s32 1, %s3
  %s6 = scalar_select 0, %s5, %s3
  $region1: #{tpu_custom_call.1} parent=0
    #allocation2 [shape = 'u8[16384]{0}', space=vmem, size = 0x4000, scoped, tag = 'input window, operand 0']
    #allocation3 [shape = 's32[2]{0}', space=sflag, size = 0x8, scoped, tag = 'scoped memory for tpu_custom_call.1']
    #allocation4 [shape = 's32[2]{0}', space=sflag, size = 0x8, scoped, tag = 'scoped memory for tpu_custom_call.1']
    #allocation5 [shape = 'u8[16384]{0}', space=vmem, size = 0x4000, scoped, tag = 'output window, operand 0']
    %7 = vsyncpa [#allocation3], 0
    %s8 = scalar_lea.sflag [#allocation3], 1
    %9 = vsyncpa %s8, 0
    %10 = vsyncpa [#allocation4], 0
    %s11 = scalar_lea.sflag [#allocation4], 1
    %12 = vsyncpa %s11, 0
    loop: start=0, step=1, limit=4
    $region2: #{tpu_custom_call.1} parent=1 // loop_pre_header
      _
    $region3: #{tpu_custom_call.1} parent=1 // loop_header
      %s14 = sphi 0, %s18
      %p15 = scmp.ge.s32.totalorder %s14, 4
      %s21 = sphi 0, %s33
      %s22 = sphi 0, %s29
      %s23 = sphi 0, %s21
      %s24 = sphi 0, %s22
      %s25 = sphi 0, %s23
      %s26 = sphi 0, %s24
      %s38 = sphi 0, %s40
      %s41 = sphi 0, %s38
      %s42 = sphi 0, %s41
      %s58 = sphi 0, %s42
      %s64 = sphi 0, %s66
      %s67 = sphi 0, %s64
      %s68 = sphi 0, %s67
      %s84 = sphi 0, %s68
      %s92 = sphi 0, %s94
      %s95 = sphi 0, %s92
      %s96 = sphi 0, %s95
      %s112 = sphi 0, %s96
    $region4: #{tpu_custom_call.1} parent=1 // loop_header_branch
      %17 = sbr.rel (%p15) target = $region8
    $region5: #{tpu_custom_call.1} parent=1 // loop_body
      %s19 = ssub.s32 %s14, 1
      %s20 = ssub.s32 %s14, 2
      %s27 = sadd.s32 1, %s22
      %p28 = scmp.ge.s32.totalorder %s27, 2
      %s29 = scalar_select %p28, 0, %s27
      %s30 = sadd.s32 1, %s21
      %s31 = scalar_select %p28, %s30, %s21
      %p32 = scmp.ge.s32.totalorder %s31, 1
      %s33 = scalar_select %p32, 0, %s31
      %s34 = ssub.s32 %s21, %s33
      %s35 = ssub.s32 %s22, %s29
      %s36 = sor.u32 %s34, %s35
      %p37 = scmp.eq.s32.totalorder %s36, 0
      %s39 = sadd.s32 %s38, 1
      %s40 = scalar_select %p37, %s38, %s39
      %p43 = pneg %p37
      %p44 = scmp.eq.s32.totalorder %s14, 1
      %p45 = por %p43, %p44
      %p46 = scmp.ne.s32.totalorder %s38, %s41
      %p47 = scmp.eq.s32.totalorder %s14, 0
      %p48 = por %p46, %p47
      %p49 = scmp.ne.s32.totalorder %s38, %s41
      %p50 = scmp.eq.s32.totalorder %s19, 1
      %p51 = por %p49, %p50
      %p52 = scmp.ne.s32.totalorder %s41, %s42
      %p53 = scmp.eq.s32.totalorder %s19, 0
      %p54 = por %p52, %p53
      %p55 = scmp.ne.s32.totalorder %s41, %s42
      %p56 = scmp.eq.s32.totalorder %s20, 1
      %p57 = por %p55, %p56
      %p59 = scmp.ne.s32.totalorder %s42, %s58
      %p60 = scmp.eq.s32.totalorder %s20, 0
      %p61 = por %p59, %p60
      %s62 = ssub.s32 %s21, %s33
      %p63 = scmp.eq.s32.totalorder %s62, 0
      %s65 = sadd.s32 %s64, 1
      %s66 = scalar_select %p63, %s64, %s65
      %p69 = pneg %p63
      %p70 = scmp.eq.s32.totalorder %s14, 1
      %p71 = por %p69, %p70
      %p72 = scmp.ne.s32.totalorder %s64, %s67
      %p73 = scmp.eq.s32.totalorder %s14, 0
      %p74 = por %p72, %p73
      %p75 = scmp.ne.s32.totalorder %s64, %s67
      %p76 = scmp.eq.s32.totalorder %s19, 1
      %p77 = por %p75, %p76
      %p78 = scmp.ne.s32.totalorder %s67, %s68
      %p79 = scmp.eq.s32.totalorder %s19, 0
      %p80 = por %p78, %p79
      %p81 = scmp.ne.s32.totalorder %s67, %s68
      %p82 = scmp.eq.s32.totalorder %s20, 1
      %p83 = por %p81, %p82
      %p85 = scmp.ne.s32.totalorder %s68, %s84
      %p86 = scmp.eq.s32.totalorder %s20, 0
      %p87 = por %p85, %p86
      %s88 = ssub.s32 %s21, %s33
      %s89 = ssub.s32 %s22, %s29
      %s90 = sor.u32 %s88, %s89
      %p91 = scmp.eq.s32.totalorder %s90, 0
      %s93 = sadd.s32 %s92, 1
      %s94 = scalar_select %p91, %s92, %s93
      %p97 = pneg %p91
      %p98 = scmp.eq.s32.totalorder %s14, 1
      %p99 = por %p97, %p98
      %p100 = scmp.ne.s32.totalorder %s92, %s95
      %p101 = scmp.eq.s32.totalorder %s14, 0
      %p102 = por %p100, %p101
      %p103 = scmp.ne.s32.totalorder %s92, %s95
      %p104 = scmp.eq.s32.totalorder %s19, 1
      %p105 = por %p103, %p104
      %p106 = scmp.ne.s32.totalorder %s95, %s96
      %p107 = scmp.eq.s32.totalorder %s19, 0
      %p108 = por %p106, %p107
      %p109 = scmp.ne.s32.totalorder %s95, %s96
      %p110 = scmp.eq.s32.totalorder %s20, 1
      %p111 = por %p109, %p110
      %p113 = scmp.ne.s32.totalorder %s96, %s112
      %p114 = scmp.eq.s32.totalorder %s20, 0
      %p115 = por %p113, %p114
      %p116 = scmp.le.s32.totalorder 1, %s14
      %p117 = scmp.lt.s32.totalorder %s14, 3
      %p118 = pnand %p116, %p117
      %p119 = pneg %p118
      // Predicated region
      $region9: #{tpu_custom_call.1} parent=5 // pred_check
        _
      $region10: #{tpu_custom_call.1} parent=5 // pred_check_branch
        %121 = sbr.rel (%p118) target = $region12
      $region11: #{tpu_custom_call.1} parent=5 // pred_region
        %s122 = ssub.s32 %s14, 1
        // Predicated region
        $region13: #{tpu_custom_call.1} parent=11 // pred_check
          %p123 = pneg %p80
        $region14: #{tpu_custom_call.1} parent=11 // pred_check_branch
          %125 = sbr.rel (%p123) target = $region16
        $region15: #{tpu_custom_call.1} parent=11 // pred_region
          %s126 = smul.u32 2, %s23
          %p127 = scmp.lt.s32.totalorder %s126, 1
          %s128 = scalar_select %p127, %s126, 1
          %s129 = smul.addr %s128, 8
          %s130 = scalar_lea.vmem %s1, %s129
          %s131 = smul.u32 2, %s23
        $region16: #{tpu_custom_call.1} parent=11 // pred_fallthru
          _
      $region12: #{tpu_custom_call.1} parent=5 // pred_fallthru
        _
      %p132 = scmp.lt.s32.totalorder %s14, 2
      // Predicated region
      $region17: #{tpu_custom_call.1} parent=5 // pred_check
        %p133 = pneg %p132
      $region18: #{tpu_custom_call.1} parent=5 // pred_check_branch
        %135 = sbr.rel (%p133) target = $region20
      $region19: #{tpu_custom_call.1} parent=5 // pred_region
        // Predicated region
        $region21: #{tpu_custom_call.1} parent=19 // pred_check
          %p136 = pneg %p48
        $region22: #{tpu_custom_call.1} parent=19 // pred_check_branch
          %138 = sbr.rel (%p136) target = $region24
        $region23: #{tpu_custom_call.1} parent=19 // pred_region
          %s139 = sand.u32 %s38, 1
          %s140 = scalar_lea.sflag [#allocation3], %s139
          %s141 = sand.u32 %s38, 1
          %s142 = smul.addr %s141, 16
          %s143 = scalar_lea.vmem [#allocation2], %s142
          %s144 = smul.u32 2, %s21
          %s146 = ssub.s32 256, 256
          %147 = vsyncadd %s140, %s146
          %s148 = smul.addr %s144, 2
          %s149 = sadd.s32 %s22, %s148
          %s150 = smul.addr %s149, 128
          %s151 = scalar_lea.hbm %s0, %s150
          %s152 = sshll.u32 %s143, 4
          %s153 = int_to_ptr.vmem [resolvable:$true] %s152
          %158 = dma.hbm_to_vmem [thread:$0]  %s151, 256, %s153, %s140, 256, 128, 8
        $region24: #{tpu_custom_call.1} parent=19 // pred_fallthru
          _
      $region20: #{tpu_custom_call.1} parent=5 // pred_fallthru
        _
      %p159 = scmp.le.s32.totalorder 1, %s14
      %p160 = scmp.lt.s32.totalorder %s14, 3
      %p161 = pnand %p159, %p160
      %p162 = pneg %p161
      // Predicated region
      $region25: #{tpu_custom_call.1} parent=5 // pred_check
        _
      $region26: #{tpu_custom_call.1} parent=5 // pred_check_branch
        %164 = sbr.rel (%p161) target = $region28
      $region27: #{tpu_custom_call.1} parent=5 // pred_region
        %s165 = ssub.s32 %s14, 1
        %s166 = sand.u32 %s41, 1
        %s167 = scalar_lea.sflag [#allocation3], %s166
        %s168 = sand.u32 %s41, 1
        %s169 = smul.addr %s168, 16
        %s170 = scalar_lea.vmem [#allocation2], %s169
        // Predicated region
        $region29: #{tpu_custom_call.1} parent=27 // pred_check
          %p171 = pneg %p54
        $region30: #{tpu_custom_call.1} parent=27 // pred_check_branch
          %173 = sbr.rel (%p171) target = $region32
        $region31: #{tpu_custom_call.1} parent=27 // pred_region
          %174 = dma.done %s167, 256
        $region32: #{tpu_custom_call.1} parent=27 // pred_fallthru
          _
        %s175 = sand.u32 %s41, 1
        %s176 = scalar_lea.sflag [#allocation3], %s175
        %s177 = sand.u32 %s41, 1
        %s178 = smul.addr %s177, 16
        %s179 = scalar_lea.vmem [#allocation2], %s178
        %p180 = pneg %p54
        %p181 = pneg %p51
        %s182 = smul.u32 2, %s23
        %p183 = scmp.lt.s32.totalorder %s182, 1
        %s184 = scalar_select %p183, %s182, 1
        %s185 = smul.addr %s184, 8
        %s186 = scalar_lea.vmem %s1, %s185
        %p187 = pneg %p80
        %p188 = pneg %p77
        %p189 = pneg %p108
        %p190 = pneg %p105
        %s191 = sand.u32 %s95, 1
        %s192 = scalar_lea.sflag [#allocation4], %s191
        %s193 = sand.u32 %s95, 1
        %s194 = smul.addr %s193, 16
        %s195 = scalar_lea.vmem [#allocation5], %s194
        %s196 = smul.u32 2, %s23
        %s197 = smul.u32 2, %s23
        %p198 = scmp.lt.s32.totalorder %s197, 1
        %s199 = scalar_select %p198, %s197, 1
        %s200 = smul.addr %s199, 8
        %s201 = scalar_lea.vmem %s1, %s200
        %s202 = smul.u32 2, %s23
        %s203 = smul.u32 2, %s23
        %v204 = vld [vmem:[%s170] sm:$0xff]
        %v205 = vld [vmem:[%s170 + $0x8] sm:$0xf]
        %v206 = vld [vmem:[%s201] sm:$0xff]
        %v207 = vld [vmem:[%s201 + $0x8] sm:$0xf]
        %209 = vset.pattern.permute.xlu0 0
        %210 = vperm.xlu0 %209, %v206
        %v211 = vpop.permute.xlu0 %210
        %214 = vset.pattern.permute.xlu0 0
        %215 = vperm.xlu0 %214, %v207
        %v216 = vpop.permute.xlu0 %215
        %v218 = vadd.f32 %v204, %v211
        %v219 = vadd.f32 %v205, %v216
        %220 = vst [vmem:[%s195] sm:$0xff] %v218
        %221 = vst [vmem:[%s195 + $0x8] sm:$0xf] %v219
        %s222 = sand.u32 %s95, 1
        %s223 = scalar_lea.sflag [#allocation4], %s222
        %s224 = sand.u32 %s95, 1
        %s225 = smul.addr %s224, 16
        %s226 = scalar_lea.vmem [#allocation5], %s225
        // Predicated region
        $region33: #{tpu_custom_call.1} parent=27 // pred_check
          %p227 = pneg %p105
        $region34: #{tpu_custom_call.1} parent=27 // pred_check_branch
          %229 = sbr.rel (%p227) target = $region36
        $region35: #{tpu_custom_call.1} parent=27 // pred_region
          %s230 = smul.u32 2, %s23
          %s232 = ssub.s32 256, 256
          %233 = vsyncadd %s223, %s232
          %s234 = smul.addr %s230, 2
          %s235 = sadd.s32 %s24, %s234
          %s236 = smul.addr %s235, 128
          %s237 = scalar_lea.hbm %s2, %s236
          %s238 = sshll.u32 %s226, 4
          %s239 = int_to_ptr.vmem [resolvable:$true] %s238
          %244 = dma.vmem_to_hbm [thread:$0]  %s239, 256, %s237, %s223, 128, 256, 8
        $region36: #{tpu_custom_call.1} parent=27 // pred_fallthru
          _
      $region28: #{tpu_custom_call.1} parent=5 // pred_fallthru
        _
      %p245 = scmp.le.s32.totalorder 2, %s14
      // Predicated region
      $region37: #{tpu_custom_call.1} parent=5 // pred_check
        %p246 = pneg %p245
      $region38: #{tpu_custom_call.1} parent=5 // pred_check_branch
        %248 = sbr.rel (%p246) target = $region40
      $region39: #{tpu_custom_call.1} parent=5 // pred_region
        %s249 = ssub.s32 %s14, 2
        // Predicated region
        $region41: #{tpu_custom_call.1} parent=39 // pred_check
          %p250 = pneg %p111
        $region42: #{tpu_custom_call.1} parent=39 // pred_check_branch
          %252 = sbr.rel (%p250) target = $region44
        $region43: #{tpu_custom_call.1} parent=39 // pred_region
          %s253 = sand.u32 %s96, 1
          %s254 = scalar_lea.sflag [#allocation4], %s253
          %s255 = sand.u32 %s96, 1
          %s256 = smul.addr %s255, 16
          %s257 = scalar_lea.vmem [#allocation5], %s256
          %258 = dma.done %s254, 256
        $region44: #{tpu_custom_call.1} parent=39 // pred_fallthru
          _
      $region40: #{tpu_custom_call.1} parent=5 // pred_fallthru
        _
    $region6: #{tpu_custom_call.1} parent=1 // loop_footer
      %s18 = sadd.s32 1, %s14
    $region7: #{tpu_custom_call.1} parent=1 // loop_footer_branch
      %13 = sbr.rel target = $region3
    $region8: #{tpu_custom_call.1} parent=1 // loop_exit
      _
    %259 = vsyncpa [#allocation3], 1
    %s260 = scalar_lea.sflag [#allocation3], 1
    %261 = vsyncpa %s260, 1
    %262 = vsyncpa [#allocation4], 1
    %s263 = scalar_lea.sflag [#allocation4], 1
    %264 = vsyncpa %s263, 1

</llo_original>
